<compile_context>
chip_gen: v5e
topology: v5e:2x2
jax: 0.10.0
libtpu: 0.0.40
codegen_flags: <defaults>
</compile_context>

<pallas_src>
import functools
import math

import jax
import jax.numpy as jnp
from jax.experimental import pallas as pl
from jax.experimental.pallas import tpu as pltpu

DIM = 32
SEQ = 8
BATCH = 2
EPS = 1e-5

_LANES = 128
_TARGET_TILE_BYTES = 2 << 20  # ~2 MiB per tile.


def _cdiv(a, b):
    return -(-a // b)


def _sublane(dtype):
    # Sublane packing multiple: 8 for 4-byte, 16 for 2-byte, 32 for 1-byte dtypes.
    return 32 // jnp.dtype(dtype).itemsize


def _choose_block_rows(nrows, row_bytes, sublane):
    """VMEM- and dtype-aware row-tile size (multiple of `sublane`)."""
    blk = max(sublane,
              (_TARGET_TILE_BYTES // max(row_bytes, 1)) // sublane * sublane)
    # Guarantee >= 2 grid steps for multi-MiB slabs so v7x's two TensorCores
    # each get a share of the HBM bandwidth via the "parallel" grid axis.
    if nrows * row_bytes > (2 << 20):
        half = _cdiv(_cdiv(nrows, 2), sublane) * sublane
        blk = min(blk, max(half, sublane))
    # Never bigger than the (sublane-rounded) problem itself.
    blk = min(blk, _cdiv(nrows, sublane) * sublane)
    return max(blk, sublane)


def _rmsnorm_packed_kernel(x_ref, w_ref, seg_ref, o_ref, *, eps, dim):
    # x_ref: (blk, 128) tile, each vreg row holds 128//dim logical rows.
    x = x_ref[...]
    xf = x.astype(jnp.float32)                        # torch: x.float()
    # Per-dim-segment sum of squares via one MXU matmul with a block-diagonal
    # ones matrix; result is already broadcast across each dim-wide segment.
    ssum = jnp.dot(xf * xf, seg_ref[...], preferred_element_type=jnp.float32)
    ms = ssum * (1.0 / dim)                           # mean over last dim
    xn = (xf * jax.lax.rsqrt(ms + eps)).astype(x.dtype)   # torch: .type_as(x)
    o_ref[...] = (xn * w_ref[...]).astype(o_ref.dtype)    # * weight


def _rmsnorm_rows_kernel(x_ref, w_ref, o_ref, *, eps):
    # x_ref: (blk, dim) tile; w_ref: (1, dim) weight broadcast over rows.
    x = x_ref[...]
    xf = x.astype(jnp.float32)
    ms = jnp.mean(xf * xf, axis=-1, keepdims=True)
    xn = (xf * jax.lax.rsqrt(ms + eps)).astype(x.dtype)
    o_ref[...] = (xn * w_ref[...]).astype(o_ref.dtype)


def rmsnorm(x, weight, eps=EPS):
    """RMSNorm over the last dim of x. x: (..., dim), weight: (dim,)."""
    orig_shape = x.shape
    dim = orig_shape[-1]
    rows = math.prod(orig_shape[:-1]) if len(orig_shape) > 1 else 1

    out_dtype = jnp.result_type(x.dtype, weight.dtype)
    sublane = max(_sublane(x.dtype), _sublane(out_dtype))
    in_isz = jnp.dtype(x.dtype).itemsize
    out_isz = jnp.dtype(out_dtype).itemsize
    w_isz = jnp.dtype(weight.dtype).itemsize

    x2 = x.reshape(rows, dim)
    w2 = weight.reshape(1, dim)

    if dim < _LANES and _LANES % dim == 0:
        # ---------- lane-packed path (e.g. dim=32 -> 4 rows per vreg row) ----
        pack = _LANES // dim
        prows = _cdiv(rows, pack)
        pad0 = prows * pack - rows
        if pad0:
            x2 = jnp.pad(x2, ((0, pad0), (0, 0)))
        xp = x2.reshape(prows, _LANES)
        wp = jnp.tile(w2, (1, pack))
        seg = jnp.kron(jnp.eye(pack, dtype=jnp.float32),
                       jnp.ones((dim, dim), dtype=jnp.float32))

        row_bytes = _LANES * max(in_isz, out_isz)
        blk = _choose_block_rows(prows, row_bytes, sublane)
        padded = _cdiv(prows, blk) * blk
        if padded != prows:
            xp = jnp.pad(xp, ((0, padded - prows), (0, 0)))
        grid = (padded // blk,)

        cost = pl.CostEstimate(
            flops=int(3 * rows * dim + 2 * prows * _LANES * _LANES),
            transcendentals=int(rows),
            bytes_accessed=int(rows * dim * (in_isz + out_isz) + dim * w_isz),
        )
        out = pl.pallas_call(
            functools.partial(_rmsnorm_packed_kernel, eps=eps, dim=dim),
            out_shape=jax.ShapeDtypeStruct((padded, _LANES), out_dtype),
            grid=grid,
            in_specs=[
                pl.BlockSpec((blk, _LANES), lambda i: (i, 0)),
                pl.BlockSpec((1, _LANES), lambda i: (0, 0)),
                pl.BlockSpec((_LANES, _LANES), lambda i: (0, 0)),
            ],
            out_specs=pl.BlockSpec((blk, _LANES), lambda i: (i, 0)),
            compiler_params=pltpu.CompilerParams(
                dimension_semantics=("parallel",)),
            cost_estimate=cost,
        )(xp, wp, seg)
        out = out[:prows].reshape(prows * pack, dim)[:rows]
        return out.reshape(orig_shape)

    # ---------- plain (rows, dim) path: dim >= 128 (already lane-dense) or a
    # dim that doesn't evenly pack into 128 lanes. -------------------------
    row_bytes = dim * max(in_isz, out_isz)
    blk = _choose_block_rows(rows, row_bytes, sublane)
    padded = _cdiv(rows, blk) * blk
    if padded != rows:
        x2 = jnp.pad(x2, ((0, padded - rows), (0, 0)))
    grid = (padded // blk,)

    cost = pl.CostEstimate(
        flops=int(3 * rows * dim),
        transcendentals=int(rows),
        bytes_accessed=int(rows * dim * (in_isz + out_isz) + dim * w_isz),
    )
    out = pl.pallas_call(
        functools.partial(_rmsnorm_rows_kernel, eps=eps),
        out_shape=jax.ShapeDtypeStruct((padded, dim), out_dtype),
        grid=grid,
        in_specs=[
            pl.BlockSpec((blk, dim), lambda i: (i, 0)),
            pl.BlockSpec((1, dim), lambda i: (0, 0)),
        ],
        out_specs=pl.BlockSpec((blk, dim), lambda i: (i, 0)),
        compiler_params=pltpu.CompilerParams(
            dimension_semantics=("parallel",)),
        cost_estimate=cost,
    )(x2, w2)
    return out[:rows].reshape(orig_shape)


def reference(x, weight, eps=EPS):
    """Pure-JAX mirror of the PyTorch RMSNorm forward."""
    xf = x.astype(jnp.float32)
    ms = jnp.mean(xf * xf, axis=-1, keepdims=True)
    xn = (xf * jax.lax.rsqrt(ms + eps)).astype(x.dtype)
    return xn * weight


if __name__ == "__main__":
    key = jax.random.PRNGKey(0)
    kx, kw = jax.random.split(key)
    x = jax.random.normal(kx, (BATCH, SEQ, DIM), jnp.float32)
    weight = 1.0 + 0.05 * jax.random.normal(kw, (DIM,), jnp.float32)

    out = rmsnorm(x, weight)
    out = jax.block_until_ready(out)

    ref = reference(x, weight)
    assert out.shape == x.shape
    assert bool(jnp.all(jnp.isfinite(out)))
    assert jnp.allclose(out, ref, atol=1e-5, rtol=1e-5), float(
        jnp.max(jnp.abs(out - ref)))
    print("KERNEL_OK")
</pallas_src>

<mosaic_0001>
module attributes {stable_mosaic.version = 11 : i64} {
  func.func @_rmsnorm_packed_kernel(%arg0: i32, %arg1: memref<8x128xf32, #tpu.memory_space<vmem>>, %arg2: memref<1x128xf32, #tpu.memory_space<vmem>>, %arg3: memref<128x128xf32, #tpu.memory_space<vmem>>, %arg4: memref<8x128xf32, #tpu.memory_space<vmem>>) attributes {dimension_semantics = [#tpu.dimension_semantics<parallel>], iteration_bounds = array<i64: 1>, scalar_prefetch = 0 : i64, scratch_operands = 0 : i64, tpu.core_type = #tpu.core_type<tc>, window_params = [{transform_indices = @transform_0, window_bounds = array<i64: 8, 128>}, {pipeline_mode = #tpu.pipeline_mode<synchronous>, transform_indices = @transform_1, window_bounds = array<i64: 1, 128>}, {pipeline_mode = #tpu.pipeline_mode<synchronous>, transform_indices = @transform_2, window_bounds = array<i64: 128, 128>}, {transform_indices = @transform_3, window_bounds = array<i64: 8, 128>}]} {
    %c0 = arith.constant 0 : index
    %c0_0 = arith.constant 0 : index
    %0 = vector.load %arg1[%c0, %c0_0] : memref<8x128xf32, #tpu.memory_space<vmem>>, vector<8x128xf32>
    %1 = arith.mulf %0, %0 : vector<8x128xf32>
    %c0_1 = arith.constant 0 : index
    %c0_2 = arith.constant 0 : index
    %2 = vector.load %arg3[%c0_1, %c0_2] : memref<128x128xf32, #tpu.memory_space<vmem>>, vector<128x128xf32>
    %cst = arith.constant dense<0.000000e+00> : vector<8x128xf32>
    %3 = tpu.matmul %1, %2, %cst {dimension_numbers = #tpu.dot_dimension_numbers<[1], [0], [0], [1], [0, 0, 1, 1], [], []>} : vector<8x128xf32>, vector<128x128xf32>, vector<8x128xf32> -> vector<8x128xf32>
    %cst_3 = arith.constant 3.125000e-02 : f32
    %4 = vector.broadcast %cst_3 : f32 to vector<8x128xf32>
    %5 = arith.mulf %3, %4 : vector<8x128xf32>
    %cst_4 = arith.constant 9.99999974E-6 : f32
    %6 = vector.broadcast %cst_4 : f32 to vector<8x128xf32>
    %7 = arith.addf %5, %6 : vector<8x128xf32>
    %8 = math.rsqrt %7 : vector<8x128xf32>
    %9 = arith.mulf %0, %8 : vector<8x128xf32>
    %c0_5 = arith.constant 0 : index
    %c0_6 = arith.constant 0 : index
    %10 = vector.load %arg2[%c0_5, %c0_6] : memref<1x128xf32, #tpu.memory_space<vmem>>, vector<1x128xf32>
    %11 = vector.broadcast %10 : vector<1x128xf32> to vector<8x128xf32>
    %12 = arith.mulf %9, %11 : vector<8x128xf32>
    %c0_7 = arith.constant 0 : index
    %c0_8 = arith.constant 0 : index
    %13 = vector.load %arg4[%c0_7, %c0_8] : memref<8x128xf32, #tpu.memory_space<vmem>>, vector<8x128xf32>
    tpu.vector_store %arg4[%c0_7, %c0_8], %12 {strides = array<i32>} : memref<8x128xf32, #tpu.memory_space<vmem>>, vector<8x128xf32>,
    return
  }
  func.func @transform_0(%arg0: i32) -> (i32, i32) {
    %c0_i32 = arith.constant 0 : i32
    %c0_i32_0 = arith.constant 0 : i32
    return %arg0, %c0_i32 : i32, i32
  }
  func.func @transform_1(%arg0: i32) -> (i32, i32) {
    %c0_i32 = arith.constant 0 : i32
    %c0_i32_0 = arith.constant 0 : i32
    %c0_i32_1 = arith.constant 0 : i32
    return %c0_i32, %c0_i32_0 : i32, i32
  }
  func.func @transform_2(%arg0: i32) -> (i32, i32) {
    %c0_i32 = arith.constant 0 : i32
    %c0_i32_0 = arith.constant 0 : i32
    %c0_i32_1 = arith.constant 0 : i32
    return %c0_i32, %c0_i32_0 : i32, i32
  }
  func.func @transform_3(%arg0: i32) -> (i32, i32) {
    %c0_i32 = arith.constant 0 : i32
    %c0_i32_0 = arith.constant 0 : i32
    return %arg0, %c0_i32 : i32, i32
  }
}

</mosaic_0001>

<llo_original>
// kernel: tpu_custom_call.1
$region0: #{tpu_custom_call.1}
  #allocation0 [shape = 'u32[]', space=smem, size = 0x4, offset = 0x4, fixed_abs, tag = 'smem constant byte address 0x4 - core index']
  #allocation1 [shape = 'u32[72,128]{1,0:T(1,128)}', space=vmem, size = 0x9000, scoped, tag = 'internal scratch']
  %s0 = inlined_call_operand.hbm [shape: f32[8,128], index: 0, kind: input, shape index: {}]
  %s1 = inlined_call_operand.hbm [shape: f32[1,128], index: 1, kind: input, shape index: {}]
  %s2 = inlined_call_operand.hbm [shape: f32[128,128], index: 2, kind: input, shape index: {}]
  %s3 = inlined_call_operand.hbm [shape: f32[8,128], index: 3, kind: output, shape index: {}]
  %s4 = sld [smem:[#allocation0]]
  $region34: #{tpu_custom_call.1} parent=0
    _
  %s6 = ssub.s32 1, %s4
  %s7 = scalar_select 0, %s6, %s4
  $region1: #{tpu_custom_call.1} parent=0
    #allocation2 [shape = 'u8[4096]{0}', space=vmem, size = 0x1000, scoped, tag = 'input window, operand 0, single buffered']
    #allocation3 [shape = 's32[1]{0}', space=sflag, size = 0x4, scoped, tag = 'scoped memory for tpu_custom_call.1']
    #allocation4 [shape = 's32[1]{0}', space=sflag, size = 0x4, scoped, tag = 'scoped memory for tpu_custom_call.1']
    #allocation5 [shape = 'u8[512]{0}', space=vmem, size = 0x400, scoped, tag = 'input window, operand 1, single buffered']
    #allocation6 [shape = 's32[1]{0}', space=sflag, size = 0x4, scoped, tag = 'scoped memory for tpu_custom_call.1']
    #allocation7 [shape = 'u8[65536]{0}', space=vmem, size = 0x10000, scoped, tag = 'input window, operand 2, single buffered']
    #allocation8 [shape = 'u8[4096]{0}', space=vmem, size = 0x1000, scoped, tag = 'output window, operand 0, single buffered']
    %8 = vsyncpa [#allocation3], 0
    %9 = vsyncpa [#allocation6], 0
    %10 = vsyncpa [#allocation4], 0
    // Predicated region
    $region2: #{tpu_custom_call.1} parent=1 // pred_check
      _
    $region3: #{tpu_custom_call.1} parent=1 // pred_check_branch
      %12 = sbr.rel (0) target = $region5
    $region4: #{tpu_custom_call.1} parent=1 // pred_region
      %14 = vsyncadd [#allocation3], 0
      %s16 = sshll.u32 %s0, 4
      %s17 = int_to_ptr.hbm [resolvable:$true] %s16
      %s18 = sshll.u32 [#allocation2], 4
      %s19 = int_to_ptr.vmem [resolvable:$true] %s18
      %21 = dma.hbm_to_vmem [thread:$0]  %s17, 128, %s19, [#allocation3]
    $region5: #{tpu_custom_call.1} parent=1 // pred_fallthru
      _
    // Predicated region
    $region6: #{tpu_custom_call.1} parent=1 // pred_check
      _
    $region7: #{tpu_custom_call.1} parent=1 // pred_check_branch
      %23 = sbr.rel (0) target = $region9
    $region8: #{tpu_custom_call.1} parent=1 // pred_region
      %25 = vsyncadd [#allocation6], 0
      %s27 = sshll.u32 %s1, 4
      %s28 = int_to_ptr.hbm [resolvable:$true] %s27
      %s29 = sshll.u32 [#allocation5], 4
      %s30 = int_to_ptr.vmem [resolvable:$true] %s29
      %32 = dma.hbm_to_vmem [thread:$0]  %s28, 16, %s30, [#allocation6]
    $region9: #{tpu_custom_call.1} parent=1 // pred_fallthru
      _
    // Predicated region
    $region10: #{tpu_custom_call.1} parent=1 // pred_check
      _
    $region11: #{tpu_custom_call.1} parent=1 // pred_check_branch
      %34 = sbr.rel (0) target = $region13
    $region12: #{tpu_custom_call.1} parent=1 // pred_region
      %36 = vsyncadd [#allocation6], 0
      %s37 = sshll.u32 %s2, 4
      %s38 = int_to_ptr.hbm [resolvable:$true] %s37
      %s39 = sshll.u32 [#allocation7], 4
      %s40 = int_to_ptr.vmem [resolvable:$true] %s39
      %45 = dma.hbm_to_vmem [thread:$0]  %s38, 2048, %s40, [#allocation6], 128, 128, 8
    $region13: #{tpu_custom_call.1} parent=1 // pred_fallthru
      _
    // Predicated region
    $region14: #{tpu_custom_call.1} parent=1 // pred_check
      _
    $region15: #{tpu_custom_call.1} parent=1 // pred_check_branch
      %47 = sbr.rel (0) target = $region17
    $region16: #{tpu_custom_call.1} parent=1 // pred_region
      %49 = dma.done [#allocation3], 128
    $region17: #{tpu_custom_call.1} parent=1 // pred_fallthru
      _
    // Predicated region
    $region18: #{tpu_custom_call.1} parent=1 // pred_check
      _
    $region19: #{tpu_custom_call.1} parent=1 // pred_check_branch
      %51 = sbr.rel (0) target = $region21
    $region20: #{tpu_custom_call.1} parent=1 // pred_region
      %53 = dma.done [#allocation6], 16
    $region21: #{tpu_custom_call.1} parent=1 // pred_fallthru
      _
    // Predicated region
    $region22: #{tpu_custom_call.1} parent=1 // pred_check
      _
    $region23: #{tpu_custom_call.1} parent=1 // pred_check_branch
      %55 = sbr.rel (0) target = $region25
    $region24: #{tpu_custom_call.1} parent=1 // pred_region
      %57 = dma.done [#allocation6], 2048
    $region25: #{tpu_custom_call.1} parent=1 // pred_fallthru
      _
    %v58 = vld [vmem:[#allocation2] sm:$0xff]
    %v59 = vmul.f32 %v58, %v58
    %v60 = vld [vmem:[#allocation7] sm:$0xff]
    %v61 = vld [vmem:[#allocation7 + $0x8] sm:$0xff]
    %v62 = vld [vmem:[#allocation7 + $0x10] sm:$0xff]
    %v63 = vld [vmem:[#allocation7 + $0x18] sm:$0xff]
    %v64 = vld [vmem:[#allocation7 + $0x20] sm:$0xff]
    %v65 = vld [vmem:[#allocation7 + $0x28] sm:$0xff]
    %v66 = vld [vmem:[#allocation7 + $0x30] sm:$0xff]
    %v67 = vld [vmem:[#allocation7 + $0x38] sm:$0xff]
    %v68 = vld [vmem:[#allocation7 + $0x40] sm:$0xff]
    %v69 = vld [vmem:[#allocation7 + $0x48] sm:$0xff]
    %v70 = vld [vmem:[#allocation7 + $0x50] sm:$0xff]
    %v71 = vld [vmem:[#allocation7 + $0x58] sm:$0xff]
    %v72 = vld [vmem:[#allocation7 + $0x60] sm:$0xff]
    %v73 = vld [vmem:[#allocation7 + $0x68] sm:$0xff]
    %v74 = vld [vmem:[#allocation7 + $0x70] sm:$0xff]
    %v75 = vld [vmem:[#allocation7 + $0x78] sm:$0xff]
    %76 = vmatpush.msra.mxu0 %v75
    %77 = vmatpush.msra.mxu0 %v74
    %78 = vmatpush.msra.mxu0 %v73
    %79 = vmatpush.msra.mxu0 %v72
    %80 = vmatpush.msra.mxu0 %v71
    %81 = vmatpush.msra.mxu0 %v70
    %82 = vmatpush.msra.mxu0 %v69
    %83 = vmatpush.msra.mxu0 %v68
    %84 = vmatpush.msra.mxu0 %v67
    %85 = vmatpush.msra.mxu0 %v66
    %86 = vmatpush.msra.mxu0 %v65
    %87 = vmatpush.msra.mxu0 %v64
    %88 = vmatpush.msra.mxu0 %v63
    %89 = vmatpush.msra.mxu0 %v62
    %90 = vmatpush.msra.mxu0 %v61
    %91 = vmatpush.msra.mxu0 %v60
    %92 = vmatmul.f32.gmra.mxu0 %v59
    %v93 = vpop.f32.mrf.mxu0
    %v94 = vadd.f32 0.0, %v93
    %95 = vdwg.mxu0
    %v96 = vmul.f32 %v94, 0.03125
    %v97 = vadd.f32 %v96, 1e-05
    %v98 = vrsqrt.pop %v97
    %v99 = vmul.f32 %v98, %v97
    %v100 = vmul.f32 %v99, %v98
    %v101 = vmul.f32 0.5, %v100
    %v102 = vsub.f32 1.5, %v101
    %v103 = vmul.f32 %v98, %v102
    %vm104 = vweird.f32 %v97
    %vm105 = vweird.f32 %v98
    %vm106 = vmor %vm104, %vm105
    %v107 = vsel %vm106, %v98, %v103
    %v108 = vmul.f32 %v58, %v107
    %v109 = vld [vmem:[#allocation5] sm:$0x1]
    %v111 = vperm.slane %v109, 0
    %v113 = vmul.f32 %v108, %v111
    %114 = vst [vmem:[#allocation8] sm:$0xff] %v113
    // Predicated region
    $region26: #{tpu_custom_call.1} parent=1 // pred_check
      _
    $region27: #{tpu_custom_call.1} parent=1 // pred_check_branch
      %116 = sbr.rel (0) target = $region29
    $region28: #{tpu_custom_call.1} parent=1 // pred_region
      %118 = vsyncadd [#allocation4], 0
      %s120 = sshll.u32 [#allocation8], 4
      %s121 = int_to_ptr.vmem [resolvable:$true] %s120
      %s122 = sshll.u32 %s3, 4
      %s123 = int_to_ptr.hbm [resolvable:$true] %s122
      %125 = dma.vmem_to_hbm [thread:$0]  %s121, 128, %s123, [#allocation4]
    $region29: #{tpu_custom_call.1} parent=1 // pred_fallthru
      _
    // Predicated region
    $region30: #{tpu_custom_call.1} parent=1 // pred_check
      _
    $region31: #{tpu_custom_call.1} parent=1 // pred_check_branch
      %127 = sbr.rel (0) target = $region33
    $region32: #{tpu_custom_call.1} parent=1 // pred_region
      %129 = dma.done [#allocation4], 128
    $region33: #{tpu_custom_call.1} parent=1 // pred_fallthru
      _
    %130 = vsyncpa [#allocation3], 1
    %131 = vsyncpa [#allocation6], 1
    %132 = vsyncpa [#allocation4], 1

</llo_original>
